<compile_context>
chip_gen: v5e
topology: v5e:2x2
jax: 0.10.0
libtpu: 0.0.40
codegen_flags: <defaults>
</compile_context>

<pallas_src>
import functools
import math

import jax
import jax.numpy as jnp
from jax.experimental import pallas as pl
from jax.experimental.pallas import tpu as pltpu

_MIB = 1 << 20
_VMEM_FLOOR = 32 * _MIB         # ~default scoped limit; never ask for less
_VMEM_CEIL = 64 * _MIB          # v7x physical per-TC VMEM; safe on v5e/v6e too
_FUSED_VMEM_CUTOFF = 48 * _MIB  # above this, use the row-tiled two-pass path


# --------------------------------------------------------------------------
# small helpers
# --------------------------------------------------------------------------
def _mm(a, b):
    return jnp.dot(a, b, preferred_element_type=jnp.float32)


def _bmm(adj, y):
    # Batched adj @ y.  At bt == 1 use a plain 2-D MXU dot (native layout, no
    # batched-dot relayout plumbing); otherwise a batched einsum.
    if adj.shape[0] == 1:
        return jnp.dot(adj[0], y[0], preferred_element_type=jnp.float32)[None]
    return jnp.einsum("bij,bjf->bif", adj, y, preferred_element_type=jnp.float32)


def _pick_batch_tile(B):
    # Aim for >= 2-4 grid steps so the pipeline can prefetch the next tile's
    # x/adj while computing, and v7x can shard the batch axis over its 2 TCs.
    target = max(1, B // 4)
    for bt in range(target, 0, -1):
        if B % bt == 0:
            return bt
    return 1


def _pick_node_tile(N, adj_row_bytes):
    # Largest tn dividing N, multiple of 8, with the double-buffered adj row
    # tile <= ~16 MiB (near HBM roofline while fitting v7x's 64 MiB VMEM).
    limit_rows = (16 * _MIB) // max(1, 2 * adj_row_bytes)
    best = None
    for tn in range(8, N + 1, 8):
        if N % tn == 0 and tn <= limit_rows:
            best = tn
    if best is None:
        best = N  # N < 8 or no multiple-of-8 divisor: take the whole node dim
    return best


def _vmem_limit(budget_bytes):
    return int(min(max(budget_bytes, _VMEM_FLOOR), _VMEM_CEIL))


def _fused_vmem_bytes(bt, N, nfeat, nhid, nclass, in_isz, mxu_isz, out_isz):
    blocks = 2 * bt * N * ((nfeat + N) * in_isz + nclass * out_isz)   # 2x buffered
    weights = 2 * ((nfeat * nhid + nhid * nclass) * mxu_isz + (nhid + nclass) * 4)
    adj_cast = bt * N * N * mxu_isz                                   # in-kernel cast copy
    acts = bt * N * (nfeat + 2 * nhid + 2 * nclass) * 4               # fp32 temporaries
    return blocks + weights + adj_cast + acts + 2 * _MIB


def _layer_vmem_bytes(tn, N, fin, fout, adj_isz, h_isz, mxu_isz, out_isz):
    blocks = 2 * (tn * N * adj_isz + N * fin * h_isz + tn * fout * out_isz)
    weights = 2 * (fin * fout * mxu_isz + fout * 4)
    scratch = N * fout * mxu_isz
    adj_cast = tn * N * mxu_isz
    acts = tn * (fin + 2 * fout) * 4
    return blocks + weights + scratch + adj_cast + acts + 2 * _MIB


def _weight_spec(shape, single_buffered):
    # Weights/biases: constant block index -> resident across grid steps.
    # Single-buffer them to reclaim VMEM headroom for bigger adj tiles.
    if single_buffered:
        return pl.BlockSpec(shape, lambda *_: (0,) * len(shape),
                            pipeline_mode=pl.Buffered(1))
    return pl.BlockSpec(shape, lambda *_: (0,) * len(shape))


def _call_with_weight_buffering(make_call, args):
    # Try pl.Buffered(1) on the resident weights; fall back to the default
    # double-buffering if this Pallas version rejects a buffer count of 1.
    try:
        return make_call(True)(*args)
    except Exception:
        return make_call(False)(*args)


# --------------------------------------------------------------------------
# fused whole-graph kernel (small / medium N: per-graph adj fits VMEM)
# --------------------------------------------------------------------------
def gcn_fused_kernel(x_ref, adj_ref, w1_ref, b1_ref, w2_ref, b2_ref, o_ref):
    bt, N, nfeat = x_ref.shape
    nhid = w1_ref.shape[1]
    nclass = w2_ref.shape[1]
    mxu_dt = w1_ref.dtype  # MXU operand dtype (bf16 default, fp32 exact path)

    # fp32 arrives from HBM; cast to the MXU dtype on the VPU after the DMA.
    adj = adj_ref[...].astype(mxu_dt)         # (bt, N, N)
    x = x_ref[...]                             # (bt, N, nfeat) fp32

    # ---- layer 1: relu(adj @ x @ W1 + b1) --------------------------------
    # Contract adj against the narrower feature width (exact reassociation).
    if nfeat <= nhid:
        ax = _bmm(adj, x.astype(mxu_dt))                              # (bt,N,nfeat) f32
        h1 = _mm(ax.reshape(bt * N, nfeat).astype(mxu_dt), w1_ref[...])
    else:
        s1 = _mm(x.reshape(bt * N, nfeat).astype(mxu_dt), w1_ref[...])
        h1 = _bmm(adj, s1.reshape(bt, N, nhid).astype(mxu_dt)).reshape(bt * N, nhid)
    h1 = jnp.maximum(h1 + b1_ref[...], 0.0)                           # fp32 elementwise

    # TODO(synk): F.dropout(training=True) not implemented; eval-mode identity.

    # ---- layer 2: tanh(adj @ h1 @ W2 + b2) -------------------------------
    # Branch on the TRUE nclass so the N^2 contraction runs at the narrowest
    # width (nclass here), not a lane-padded width.
    if nclass <= nhid:
        s2 = _mm(h1.astype(mxu_dt), w2_ref[...])                      # (bt*N,nclass) f32
        h2 = _bmm(adj, s2.reshape(bt, N, nclass).astype(mxu_dt)).reshape(bt * N, nclass)
    else:
        ah = _bmm(adj, h1.reshape(bt, N, nhid).astype(mxu_dt))
        h2 = _mm(ah.reshape(bt * N, nhid).astype(mxu_dt), w2_ref[...])
    h2 = jnp.tanh(h2 + b2_ref[...])                                   # fp32 elementwise

    o_ref[...] = h2.reshape(bt, N, nclass).astype(o_ref.dtype)


def gcn_forward_fused(x, adj, w1, b1, w2, b2, *, mxu_dtype=jnp.bfloat16,
                      batch_tile=None):
    B, N, nfeat = x.shape
    nhid = w1.shape[1]
    nclass = w2.shape[1]
    bt = _pick_batch_tile(B) if batch_tile is None else batch_tile
    assert B % bt == 0, "batch_tile must divide B"

    # Tiny resident weights in the MXU dtype; fp32 biases for the VPU/EUP path.
    # x / adj are passed in their input dtype (no wrapper cast pass).
    w1m = w1.astype(mxu_dtype)
    w2m = w2.astype(mxu_dtype)
    b1_2d = b1.reshape(1, nhid).astype(jnp.float32)
    b2_2d = b2.reshape(1, nclass).astype(jnp.float32)

    in_isz = jnp.dtype(x.dtype).itemsize
    mxu_isz = jnp.dtype(mxu_dtype).itemsize
    budget = _fused_vmem_bytes(bt, N, nfeat, nhid, nclass, in_isz, mxu_isz, in_isz)

    def make_call(single_w):
        return pl.pallas_call(
            gcn_fused_kernel,
            out_shape=jax.ShapeDtypeStruct((B, N, nclass), x.dtype),
            grid_spec=pltpu.PrefetchScalarGridSpec(
                num_scalar_prefetch=0,
                grid=(B // bt,),
                in_specs=[
                    pl.BlockSpec((bt, N, nfeat), lambda b: (b, 0, 0)),
                    pl.BlockSpec((bt, N, N), lambda b: (b, 0, 0)),
                    _weight_spec((nfeat, nhid), single_w),
                    _weight_spec((1, nhid), single_w),
                    _weight_spec((nhid, nclass), single_w),
                    _weight_spec((1, nclass), single_w),
                ],
                out_specs=pl.BlockSpec((bt, N, nclass), lambda b: (b, 0, 0)),
            ),
            compiler_params=pltpu.CompilerParams(
                dimension_semantics=("parallel",),
                vmem_limit_bytes=_vmem_limit(budget),
            ),
        )

    return _call_with_weight_buffering(make_call, (x, adj, w1m, b1_2d, w2m, b2_2d))


# --------------------------------------------------------------------------
# row-tiled graph-conv layer (production N: adj streamed as (tn, N) row tiles)
# --------------------------------------------------------------------------
def graph_conv_kernel(adj_ref, h_ref, w_ref, b_ref, o_ref, s_ref, *,
                      activation, contract_adj_first):
    # adj_ref: (tn, N)  h_ref: (N, Fin)  w_ref: (Fin, Fout)  b_ref: (1, Fout)
    # o_ref: (tn, Fout) s_ref: VMEM (N, Fout) scratch (used when Fout < Fin)
    mxu_dt = w_ref.dtype
    adj = adj_ref[...].astype(mxu_dt)          # cast after DMA; fp32 in HBM

    if contract_adj_first:
        # Fin <= Fout: (tn,N)@(N,Fin) then @(Fin,Fout) — adj contraction at Fin.
        ah = jnp.dot(adj, h_ref[...].astype(mxu_dt),
                     preferred_element_type=jnp.float32)
        out = jnp.dot(ah.astype(mxu_dt), w_ref[...],
                      preferred_element_type=jnp.float32)
    else:
        # Fout < Fin: compute s = h @ W once per graph (node-tile 0), keep it
        # in VMEM scratch, run the N^2 adj contraction at the narrow Fout.
        @pl.when(pl.program_id(1) == 0)
        def _():
            s_ref[...] = jnp.dot(h_ref[...].astype(mxu_dt), w_ref[...],
                                 preferred_element_type=jnp.float32
                                 ).astype(s_ref.dtype)
        out = jnp.dot(adj, s_ref[...], preferred_element_type=jnp.float32)

    out = out + b_ref[...]
    if activation == "relu":
        out = jnp.maximum(out, 0.0)
    elif activation == "tanh":
        out = jnp.tanh(out)
    o_ref[...] = out.astype(o_ref.dtype)


def graph_conv_layer(h, adj, w, b, *, activation, mxu_dtype=jnp.bfloat16,
                     node_tile=None, out_dtype=None):
    B, N, fin = h.shape
    fout = w.shape[1]
    out_dtype = h.dtype if out_dtype is None else out_dtype

    adj_isz = jnp.dtype(adj.dtype).itemsize
    tn = _pick_node_tile(N, N * adj_isz) if node_tile is None else node_tile
    assert N % tn == 0, "node_tile must divide N"

    wm = w.astype(mxu_dtype)
    b2d = b.reshape(1, fout).astype(jnp.float32)
    contract_adj_first = fin <= fout

    kernel = functools.partial(graph_conv_kernel, activation=activation,
                               contract_adj_first=contract_adj_first)

    h_isz = jnp.dtype(h.dtype).itemsize
    mxu_isz = jnp.dtype(mxu_dtype).itemsize
    out_isz = jnp.dtype(out_dtype).itemsize
    budget = _layer_vmem_bytes(tn, N, fin, fout, adj_isz, h_isz, mxu_isz, out_isz)

    def make_call(single_w):
        return pl.pallas_call(
            kernel,
            out_shape=jax.ShapeDtypeStruct((B, N, fout), out_dtype),
            grid_spec=pltpu.PrefetchScalarGridSpec(
                num_scalar_prefetch=0,
                grid=(B, N // tn),
                in_specs=[
                    pl.BlockSpec((None, tn, N), lambda b, i: (b, i, 0)),   # adj rows
                    pl.BlockSpec((None, N, fin), lambda b, i: (b, 0, 0)),  # full-node h
                    _weight_spec((fin, fout), single_w),
                    _weight_spec((1, fout), single_w),
                ],
                out_specs=pl.BlockSpec((None, tn, fout), lambda b, i: (b, i, 0)),
                scratch_shapes=[pltpu.VMEM((N, fout), mxu_dtype)],
            ),
            compiler_params=pltpu.CompilerParams(
                # Node-tile axis is "arbitrary": the s = h @ W scratch computed
                # at node-tile 0 is reused by later tiles of the same graph.
                dimension_semantics=("parallel", "arbitrary"),
                vmem_limit_bytes=_vmem_limit(budget),
            ),
        )

    return _call_with_weight_buffering(make_call, (adj, h, wm, b2d))


def gcn_forward_tiled(x, adj, w1, b1, w2, b2, *, mxu_dtype=jnp.bfloat16,
                      node_tile=None):
    # Two row-tiled graph-conv passes: adj is never resident as a full (N, N)
    # block. The inter-layer activation round-trips HBM in fp32 (N*nhid bytes,
    # negligible vs. the N^2 adj stream; could be the MXU dtype when the node
    # tile matches its sublane packing).
    h1 = graph_conv_layer(x, adj, w1, b1, activation="relu",
                          mxu_dtype=mxu_dtype, node_tile=node_tile,
                          out_dtype=jnp.float32)
    # TODO(synk): F.dropout(training=True) not implemented; eval-mode identity.
    return graph_conv_layer(h1, adj, w2, b2, activation="tanh",
                            mxu_dtype=mxu_dtype, node_tile=node_tile,
                            out_dtype=x.dtype)


# --------------------------------------------------------------------------
# dispatcher
# --------------------------------------------------------------------------
def gcn_forward(x, adj, w1, b1, w2, b2, *, mxu_dtype=jnp.bfloat16,
                batch_tile=None, node_tile=None, force_tiled=False):
    B, N, nfeat = x.shape
    nhid = w1.shape[1]
    nclass = w2.shape[1]
    bt = _pick_batch_tile(B) if batch_tile is None else batch_tile

    fused_bytes = _fused_vmem_bytes(
        bt, N, nfeat, nhid, nclass,
        jnp.dtype(x.dtype).itemsize, jnp.dtype(mxu_dtype).itemsize,
        jnp.dtype(x.dtype).itemsize)

    if force_tiled or fused_bytes > _FUSED_VMEM_CUTOFF:
        return gcn_forward_tiled(x, adj, w1, b1, w2, b2,
                                 mxu_dtype=mxu_dtype, node_tile=node_tile)
    return gcn_forward_fused(x, adj, w1, b1, w2, b2,
                             mxu_dtype=mxu_dtype, batch_tile=bt)


def init_gcn_params(key, nfeat, nhid, nclass):
    """Deterministic init mirroring GraphConvolution.reset_parameters."""
    k1, k2, k3, k4 = jax.random.split(key, 4)
    stdv1 = 1.0 / math.sqrt(nhid)
    stdv2 = 1.0 / math.sqrt(nclass)
    w1 = jax.random.uniform(k1, (nfeat, nhid), jnp.float32, -stdv1, stdv1)
    b1 = jax.random.uniform(k2, (nhid,), jnp.float32, -stdv1, stdv1)
    w2 = jax.random.uniform(k3, (nhid, nclass), jnp.float32, -stdv2, stdv2)
    b2 = jax.random.uniform(k4, (nclass,), jnp.float32, -stdv2, stdv2)
    return w1, b1, w2, b2


if __name__ == "__main__":
    key = jax.random.PRNGKey(0)
    kx, kadj, kparams = jax.random.split(key, 3)

    B, N = 2, 16                      # batch, number of graph nodes
    nfeat, nhid, nclass = 8, 32, 8

    x = jax.random.normal(kx, (B, N, nfeat), jnp.float32)
    adj_raw = jax.random.uniform(kadj, (B, N, N), jnp.float32)
    adj = adj_raw / jnp.sum(adj_raw, axis=-1, keepdims=True)

    w1, b1, w2, b2 = init_gcn_params(kparams, nfeat, nhid, nclass)

    # Reference: pure JAX, matches the PyTorch forward in eval mode.
    ref = jnp.tanh(
        jnp.einsum(
            "bij,bjk->bik",
            adj,
            jnp.maximum(jnp.einsum("bij,bjk->bik", adj, x @ w1) + b1, 0.0) @ w2,
        )
        + b2
    )

    # Fused path, exact precision (fp32 MXU operands).
    out_f32 = jax.block_until_ready(
        gcn_forward(x, adj, w1, b1, w2, b2, mxu_dtype=jnp.float32))
    assert out_f32.shape == (B, N, nclass)
    assert jnp.allclose(out_f32, ref, atol=1e-5, rtol=1e-5)

    # Fused path, default fast path (bf16 MXU operands, fp32 accumulation).
    out_bf16 = jax.block_until_ready(gcn_forward(x, adj, w1, b1, w2, b2))
    assert out_bf16.shape == (B, N, nclass)
    assert jnp.allclose(out_bf16, ref, atol=3e-2, rtol=3e-2)

    # Row-tiled two-pass path (auto-selected at production N); exercised here
    # with node_tile=8 so the grid has multiple adj row tiles per graph.
    out_tiled_f32 = jax.block_until_ready(
        gcn_forward(x, adj, w1, b1, w2, b2, mxu_dtype=jnp.float32,
                    force_tiled=True, node_tile=8))
    assert out_tiled_f32.shape == (B, N, nclass)
    assert jnp.allclose(out_tiled_f32, ref, atol=1e-5, rtol=1e-5)

    out_tiled_bf16 = jax.block_until_ready(
        gcn_forward(x, adj, w1, b1, w2, b2, force_tiled=True, node_tile=8))
    assert jnp.allclose(out_tiled_bf16, ref, atol=3e-2, rtol=3e-2)

    print("KERNEL_OK")
</pallas_src>

<mosaic_0001>
module attributes {stable_mosaic.version = 11 : i64} {
  func.func @gcn_fused_kernel(%arg0: i32, %arg1: memref<1x16x8xf32, #tpu.memory_space<vmem>>, %arg2: memref<1x16x16xf32, #tpu.memory_space<vmem>>, %arg3: memref<8x32xf32, #tpu.memory_space<vmem>>, %arg4: memref<1x32xf32, #tpu.memory_space<vmem>>, %arg5: memref<32x8xf32, #tpu.memory_space<vmem>>, %arg6: memref<1x8xf32, #tpu.memory_space<vmem>>, %arg7: memref<1x16x8xf32, #tpu.memory_space<vmem>>) attributes {dimension_semantics = [#tpu.dimension_semantics<parallel>], iteration_bounds = array<i64: 2>, scalar_prefetch = 0 : i64, scratch_operands = 0 : i64, tpu.core_type = #tpu.core_type<tc>, window_params = [{transform_indices = @transform_0, window_bounds = array<i64: 1, 16, 8>}, {transform_indices = @transform_1, window_bounds = array<i64: 1, 16, 16>}, {pipeline_mode = #tpu.pipeline_mode<synchronous>, transform_indices = @transform_2, window_bounds = array<i64: 8, 32>}, {pipeline_mode = #tpu.pipeline_mode<synchronous>, transform_indices = @transform_3, window_bounds = array<i64: 1, 32>}, {pipeline_mode = #tpu.pipeline_mode<synchronous>, transform_indices = @transform_4, window_bounds = array<i64: 32, 8>}, {pipeline_mode = #tpu.pipeline_mode<synchronous>, transform_indices = @transform_5, window_bounds = array<i64: 1, 8>}, {transform_indices = @transform_6, window_bounds = array<i64: 1, 16, 8>}]} {
    %c0 = arith.constant 0 : index
    %c0_0 = arith.constant 0 : index
    %c0_1 = arith.constant 0 : index
    %0 = vector.load %arg2[%c0, %c0_0, %c0_1] : memref<1x16x16xf32, #tpu.memory_space<vmem>>, vector<1x16x16xf32>
    %c0_2 = arith.constant 0 : index
    %c0_3 = arith.constant 0 : index
    %c0_4 = arith.constant 0 : index
    %1 = vector.load %arg1[%c0_2, %c0_3, %c0_4] : memref<1x16x8xf32, #tpu.memory_space<vmem>>, vector<1x16x8xf32>
    %2 = vector.shape_cast %0 : vector<1x16x16xf32> to vector<16x16xf32>
    %3 = vector.shape_cast %1 : vector<1x16x8xf32> to vector<16x8xf32>
    %cst = arith.constant dense<0.000000e+00> : vector<16x8xf32>
    %4 = tpu.matmul %2, %3, %cst {dimension_numbers = #tpu.dot_dimension_numbers<[1], [0], [0], [1], [0, 0, 1, 1], [], []>} : vector<16x16xf32>, vector<16x8xf32>, vector<16x8xf32> -> vector<16x8xf32>
    %5 = vector.shape_cast %4 : vector<16x8xf32> to vector<1x16x8xf32>
    %6 = vector.shape_cast %5 : vector<1x16x8xf32> to vector<16x8xf32>
    %c0_5 = arith.constant 0 : index
    %c0_6 = arith.constant 0 : index
    %7 = vector.load %arg3[%c0_5, %c0_6] : memref<8x32xf32, #tpu.memory_space<vmem>>, vector<8x32xf32>
    %cst_7 = arith.constant dense<0.000000e+00> : vector<16x32xf32>
    %8 = tpu.matmul %6, %7, %cst_7 {dimension_numbers = #tpu.dot_dimension_numbers<[1], [0], [0], [1], [0, 0, 1, 1], [], []>} : vector<16x8xf32>, vector<8x32xf32>, vector<16x32xf32> -> vector<16x32xf32>
    %c0_8 = arith.constant 0 : index
    %c0_9 = arith.constant 0 : index
    %9 = vector.load %arg4[%c0_8, %c0_9] : memref<1x32xf32, #tpu.memory_space<vmem>>, vector<1x32xf32>
    %10 = vector.broadcast %9 : vector<1x32xf32> to vector<16x32xf32>
    %11 = arith.addf %8, %10 : vector<16x32xf32>
    %cst_10 = arith.constant 0.000000e+00 : f32
    %12 = vector.broadcast %cst_10 : f32 to vector<16x32xf32>
    %13 = arith.maximumf %11, %12 : vector<16x32xf32>
    %c0_11 = arith.constant 0 : index
    %c0_12 = arith.constant 0 : index
    %14 = vector.load %arg5[%c0_11, %c0_12] : memref<32x8xf32, #tpu.memory_space<vmem>>, vector<32x8xf32>
    %cst_13 = arith.constant dense<0.000000e+00> : vector<16x8xf32>
    %15 = tpu.matmul %13, %14, %cst_13 {dimension_numbers = #tpu.dot_dimension_numbers<[1], [0], [0], [1], [0, 0, 1, 1], [], []>} : vector<16x32xf32>, vector<32x8xf32>, vector<16x8xf32> -> vector<16x8xf32>
    %16 = vector.shape_cast %15 : vector<16x8xf32> to vector<1x16x8xf32>
    %17 = vector.shape_cast %0 : vector<1x16x16xf32> to vector<16x16xf32>
    %18 = vector.shape_cast %16 : vector<1x16x8xf32> to vector<16x8xf32>
    %cst_14 = arith.constant dense<0.000000e+00> : vector<16x8xf32>
    %19 = tpu.matmul %17, %18, %cst_14 {dimension_numbers = #tpu.dot_dimension_numbers<[1], [0], [0], [1], [0, 0, 1, 1], [], []>} : vector<16x16xf32>, vector<16x8xf32>, vector<16x8xf32> -> vector<16x8xf32>
    %20 = vector.shape_cast %19 : vector<16x8xf32> to vector<1x16x8xf32>
    %21 = vector.shape_cast %20 : vector<1x16x8xf32> to vector<16x8xf32>
    %c0_15 = arith.constant 0 : index
    %c0_16 = arith.constant 0 : index
    %22 = vector.load %arg6[%c0_15, %c0_16] : memref<1x8xf32, #tpu.memory_space<vmem>>, vector<1x8xf32>
    %23 = vector.broadcast %22 : vector<1x8xf32> to vector<16x8xf32>
    %24 = arith.addf %21, %23 : vector<16x8xf32>
    %25 = math.tanh %24 : vector<16x8xf32>
    %26 = vector.shape_cast %25 : vector<16x8xf32> to vector<1x16x8xf32>
    %c0_17 = arith.constant 0 : index
    %c0_18 = arith.constant 0 : index
    %c0_19 = arith.constant 0 : index
    %27 = vector.load %arg7[%c0_17, %c0_18, %c0_19] : memref<1x16x8xf32, #tpu.memory_space<vmem>>, vector<1x16x8xf32>
    tpu.vector_store %arg7[%c0_17, %c0_18, %c0_19], %26 {strides = array<i32>} : memref<1x16x8xf32, #tpu.memory_space<vmem>>, vector<1x16x8xf32>,
    return
  }
  func.func @transform_0(%arg0: i32) -> (i32, i32, i32) {
    %c0_i32 = arith.constant 0 : i32
    %c0_i32_0 = arith.constant 0 : i32
    %c0_i32_1 = arith.constant 0 : i32
    return %arg0, %c0_i32, %c0_i32_0 : i32, i32, i32
  }
  func.func @transform_1(%arg0: i32) -> (i32, i32, i32) {
    %c0_i32 = arith.constant 0 : i32
    %c0_i32_0 = arith.constant 0 : i32
    %c0_i32_1 = arith.constant 0 : i32
    return %arg0, %c0_i32, %c0_i32_0 : i32, i32, i32
  }
  func.func @transform_2(%arg0: i32) -> (i32, i32) {
    %c0_i32 = arith.constant 0 : i32
    %c0_i32_0 = arith.constant 0 : i32
    %c0_i32_1 = arith.constant 0 : i32
    return %c0_i32, %c0_i32_0 : i32, i32
  }
  func.func @transform_3(%arg0: i32) -> (i32, i32) {
    %c0_i32 = arith.constant 0 : i32
    %c0_i32_0 = arith.constant 0 : i32
    %c0_i32_1 = arith.constant 0 : i32
    return %c0_i32, %c0_i32_0 : i32, i32
  }
  func.func @transform_4(%arg0: i32) -> (i32, i32) {
    %c0_i32 = arith.constant 0 : i32
    %c0_i32_0 = arith.constant 0 : i32
    %c0_i32_1 = arith.constant 0 : i32
    return %c0_i32, %c0_i32_0 : i32, i32
  }
  func.func @transform_5(%arg0: i32) -> (i32, i32) {
    %c0_i32 = arith.constant 0 : i32
    %c0_i32_0 = arith.constant 0 : i32
    %c0_i32_1 = arith.constant 0 : i32
    return %c0_i32, %c0_i32_0 : i32, i32
  }
  func.func @transform_6(%arg0: i32) -> (i32, i32, i32) {
    %c0_i32 = arith.constant 0 : i32
    %c0_i32_0 = arith.constant 0 : i32
    %c0_i32_1 = arith.constant 0 : i32
    return %arg0, %c0_i32, %c0_i32_0 : i32, i32, i32
  }
}

module attributes {stable_mosaic.version = 11 : i64} {
  func.func @gcn_fused_kernel(%arg0: i32, %arg1: memref<1x16x8xf32, #tpu.memory_space<vmem>>, %arg2: memref<1x16x16xf32, #tpu.memory_space<vmem>>, %arg3: memref<8x32xf32, #tpu.memory_space<vmem>>, %arg4: memref<1x32xf32, #tpu.memory_space<vmem>>, %arg5: memref<32x8xf32, #tpu.memory_space<vmem>>, %arg6: memref<1x8xf32, #tpu.memory_space<vmem>>, %arg7: memref<1x16x8xf32, #tpu.memory_space<vmem>>) attributes {dimension_semantics = [#tpu.dimension_semantics<parallel>], iteration_bounds = array<i64: 2>, scalar_prefetch = 0 : i64, scratch_operands = 0 : i64, tpu.core_type = #tpu.core_type<tc>, window_params = [{transform_indices = @transform_0, window_bounds = array<i64: 1, 16, 8>}, {transform_indices = @transform_1, window_bounds = array<i64: 1, 16, 16>}, {pipeline_mode = #tpu.pipeline_mode<synchronous>, transform_indices = @transform_2, window_bounds = array<i64: 8, 32>}, {pipeline_mode = #tpu.pipeline_mode<synchronous>, transform_indices = @transform_3, window_bounds = array<i64: 1, 32>}, {pipeline_mode = #tpu.pipeline_mode<synchronous>, transform_indices = @transform_4, window_bounds = array<i64: 32, 8>}, {pipeline_mode = #tpu.pipeline_mode<synchronous>, transform_indices = @transform_5, window_bounds = array<i64: 1, 8>}, {transform_indices = @transform_6, window_bounds = array<i64: 1, 16, 8>}]} {
    %c0 = arith.constant 0 : index
    %c0_0 = arith.constant 0 : index
    %c0_1 = arith.constant 0 : index
    %0 = vector.load %arg2[%c0, %c0_0, %c0_1] : memref<1x16x16xf32, #tpu.memory_space<vmem>>, vector<1x16x16xf32>
    %c0_2 = arith.constant 0 : index
    %c0_3 = arith.constant 0 : index
    %c0_4 = arith.constant 0 : index
    %1 = vector.load %arg1[%c0_2, %c0_3, %c0_4] : memref<1x16x8xf32, #tpu.memory_space<vmem>>, vector<1x16x8xf32>
    %2 = vector.shape_cast %0 : vector<1x16x16xf32> to vector<16x16xf32>
    %3 = vector.shape_cast %1 : vector<1x16x8xf32> to vector<16x8xf32>
    %cst = arith.constant dense<0.000000e+00> : vector<16x8xf32>
    %4 = tpu.matmul %2, %3, %cst {dimension_numbers = #tpu.dot_dimension_numbers<[1], [0], [0], [1], [0, 0, 1, 1], [], []>} : vector<16x16xf32>, vector<16x8xf32>, vector<16x8xf32> -> vector<16x8xf32>
    %5 = vector.shape_cast %4 : vector<16x8xf32> to vector<1x16x8xf32>
    %6 = vector.shape_cast %5 : vector<1x16x8xf32> to vector<16x8xf32>
    %c0_5 = arith.constant 0 : index
    %c0_6 = arith.constant 0 : index
    %7 = vector.load %arg3[%c0_5, %c0_6] : memref<8x32xf32, #tpu.memory_space<vmem>>, vector<8x32xf32>
    %cst_7 = arith.constant dense<0.000000e+00> : vector<16x32xf32>
    %8 = tpu.matmul %6, %7, %cst_7 {dimension_numbers = #tpu.dot_dimension_numbers<[1], [0], [0], [1], [0, 0, 1, 1], [], []>} : vector<16x8xf32>, vector<8x32xf32>, vector<16x32xf32> -> vector<16x32xf32>
    %c0_8 = arith.constant 0 : index
    %c0_9 = arith.constant 0 : index
    %9 = vector.load %arg4[%c0_8, %c0_9] : memref<1x32xf32, #tpu.memory_space<vmem>>, vector<1x32xf32>
    %10 = vector.broadcast %9 : vector<1x32xf32> to vector<16x32xf32>
    %11 = arith.addf %8, %10 : vector<16x32xf32>
    %cst_10 = arith.constant 0.000000e+00 : f32
    %12 = vector.broadcast %cst_10 : f32 to vector<16x32xf32>
    %13 = arith.maximumf %11, %12 : vector<16x32xf32>
    %c0_11 = arith.constant 0 : index
    %c0_12 = arith.constant 0 : index
    %14 = vector.load %arg5[%c0_11, %c0_12] : memref<32x8xf32, #tpu.memory_space<vmem>>, vector<32x8xf32>
    %cst_13 = arith.constant dense<0.000000e+00> : vector<16x8xf32>
    %15 = tpu.matmul %13, %14, %cst_13 {dimension_numbers = #tpu.dot_dimension_numbers<[1], [0], [0], [1], [0, 0, 1, 1], [], []>} : vector<16x32xf32>, vector<32x8xf32>, vector<16x8xf32> -> vector<16x8xf32>
    %16 = vector.shape_cast %15 : vector<16x8xf32> to vector<1x16x8xf32>
    %17 = vector.shape_cast %0 : vector<1x16x16xf32> to vector<16x16xf32>
    %18 = vector.shape_cast %16 : vector<1x16x8xf32> to vector<16x8xf32>
    %cst_14 = arith.constant dense<0.000000e+00> : vector<16x8xf32>
    %19 = tpu.matmul %17, %18, %cst_14 {dimension_numbers = #tpu.dot_dimension_numbers<[1], [0], [0], [1], [0, 0, 1, 1], [], []>} : vector<16x16xf32>, vector<16x8xf32>, vector<16x8xf32> -> vector<16x8xf32>
    %20 = vector.shape_cast %19 : vector<16x8xf32> to vector<1x16x8xf32>
    %21 = vector.shape_cast %20 : vector<1x16x8xf32> to vector<16x8xf32>
    %c0_15 = arith.constant 0 : index
    %c0_16 = arith.constant 0 : index
    %22 = vector.load %arg6[%c0_15, %c0_16] : memref<1x8xf32, #tpu.memory_space<vmem>>, vector<1x8xf32>
    %23 = vector.broadcast %22 : vector<1x8xf32> to vector<16x8xf32>
    %24 = arith.addf %21, %23 : vector<16x8xf32>
    %25 = math.tanh %24 : vector<16x8xf32>
    %26 = vector.shape_cast %25 : vector<16x8xf32> to vector<1x16x8xf32>
    %c0_17 = arith.constant 0 : index
    %c0_18 = arith.constant 0 : index
    %c0_19 = arith.constant 0 : index
    %27 = vector.load %arg7[%c0_17, %c0_18, %c0_19] : memref<1x16x8xf32, #tpu.memory_space<vmem>>, vector<1x16x8xf32>
    tpu.vector_store %arg7[%c0_17, %c0_18, %c0_19], %26 {strides = array<i32>} : memref<1x16x8xf32, #tpu.memory_space<vmem>>, vector<1x16x8xf32>,
    return
  }
  func.func @transform_0(%arg0: i32) -> (i32, i32, i32) {
    %c0_i32 = arith.constant 0 : i32
    %c0_i32_0 = arith.constant 0 : i32
    %c0_i32_1 = arith.constant 0 : i32
    return %arg0, %c0_i32, %c0_i32_0 : i32, i32, i32
  }
  func.func @transform_1(%arg0: i32) -> (i32, i32, i32) {
    %c0_i32 = arith.constant 0 : i32
    %c0_i32_0 = arith.constant 0 : i32
    %c0_i32_1 = arith.constant 0 : i32
    return %arg0, %c0_i32, %c0_i32_0 : i32, i32, i32
  }
  func.func @transform_2(%arg0: i32) -> (i32, i32) {
    %c0_i32 = arith.constant 0 : i32
    %c0_i32_0 = arith.constant 0 : i32
    %c0_i32_1 = arith.constant 0 : i32
    return %c0_i32, %c0_i32_0 : i32, i32
  }
  func.func @transform_3(%arg0: i32) -> (i32, i32) {
    %c0_i32 = arith.constant 0 : i32
    %c0_i32_0 = arith.constant 0 : i32
    %c0_i32_1 = arith.constant 0 : i32
    return %c0_i32, %c0_i32_0 : i32, i32
  }
  func.func @transform_4(%arg0: i32) -> (i32, i32) {
    %c0_i32 = arith.constant 0 : i32
    %c0_i32_0 = arith.constant 0 : i32
    %c0_i32_1 = arith.constant 0 : i32
    return %c0_i32, %c0_i32_0 : i32, i32
  }
  func.func @transform_5(%arg0: i32) -> (i32, i32) {
    %c0_i32 = arith.constant 0 : i32
    %c0_i32_0 = arith.constant 0 : i32
    %c0_i32_1 = arith.constant 0 : i32
    return %c0_i32, %c0_i32_0 : i32, i32
  }
  func.func @transform_6(%arg0: i32) -> (i32, i32, i32) {
    %c0_i32 = arith.constant 0 : i32
    %c0_i32_0 = arith.constant 0 : i32
    %c0_i32_1 = arith.constant 0 : i32
    return %arg0, %c0_i32, %c0_i32_0 : i32, i32, i32
  }
}

</mosaic_0001>

<llo_original>
// kernel: tpu_custom_call.1
$region0: #{tpu_custom_call.1}
  #allocation0 [shape = 'u32[]', space=smem, size = 0x4, offset = 0x4, fixed_abs, tag = 'smem constant byte address 0x4 - core index']
  #allocation1 [shape = 'u32[72,128]{1,0:T(1,128)}', space=vmem, size = 0x9000, scoped, tag = 'internal scratch']
  %s0 = inlined_call_operand.vmem [shape: f32[2,16,8], index: 0, kind: input, shape index: {}]
  %s1 = inlined_call_operand.vmem [shape: f32[2,16,16], index: 1, kind: input, shape index: {}]
  %s2 = inlined_call_operand.vmem [shape: f32[8,32], index: 2, kind: input, shape index: {}]
  %s3 = inlined_call_operand.vmem [shape: f32[1,32], index: 3, kind: input, shape index: {}]
  %s4 = inlined_call_operand.vmem [shape: f32[32,8], index: 4, kind: input, shape index: {}]
  %s5 = inlined_call_operand.vmem [shape: f32[1,8], index: 5, kind: input, shape index: {}]
  %s6 = inlined_call_operand.vmem [shape: f32[2,16,8], index: 6, kind: output, shape index: {}]
  %s7 = sld [smem:[#allocation0]]
  $region57: #{tpu_custom_call.1} parent=0
    _
  %s9 = ssub.s32 1, %s7
  %s10 = scalar_select 0, %s9, %s7
  loop: start=0, step=1, limit=4
  $region2: #{tpu_custom_call.1} parent=0 // loop_pre_header
    _
  $region3: #{tpu_custom_call.1} parent=0 // loop_header
    %s12 = sphi 0, %s16
    %p13 = scmp.ge.s32.totalorder %s12, 4
    %s22 = sphi 0, %s24
    %s25 = sphi 0, %s22
    %s26 = sphi 0, %s25
    %s42 = sphi 0, %s26
    %s48 = sphi 0, %s50
    %s51 = sphi 0, %s48
    %s52 = sphi 0, %s51
    %s68 = sphi 0, %s52
    %s72 = sphi 0, %s72
    %s74 = sphi 0, %s72
    %s75 = sphi 0, %s74
    %s89 = sphi 0, %s75
    %s93 = sphi 0, %s93
    %s95 = sphi 0, %s93
    %s96 = sphi 0, %s95
    %s110 = sphi 0, %s96
    %s114 = sphi 0, %s114
    %s116 = sphi 0, %s114
    %s117 = sphi 0, %s116
    %s131 = sphi 0, %s117
    %s135 = sphi 0, %s135
    %s137 = sphi 0, %s135
    %s138 = sphi 0, %s137
    %s152 = sphi 0, %s138
    %s158 = sphi 0, %s160
    %s161 = sphi 0, %s158
    %s162 = sphi 0, %s161
    %s178 = sphi 0, %s162
  $region4: #{tpu_custom_call.1} parent=0 // loop_header_branch
    %15 = sbr.rel (%p13) target = $region8
  $region5: #{tpu_custom_call.1} parent=0 // loop_body
    %s17 = ssub.s32 %s12, 1
    %s18 = ssub.s32 %s12, 2
    %s19 = sadd.s32 %s12, 1
    %s20 = ssub.s32 %s12, %s19
    %p21 = scmp.eq.s32.totalorder %s20, 0
    %s23 = sadd.s32 %s22, 1
    %s24 = scalar_select %p21, %s22, %s23
    %p27 = pneg %p21
    %p28 = scmp.eq.s32.totalorder %s12, 1
    %p29 = por %p27, %p28
    %p30 = scmp.ne.s32.totalorder %s22, %s25
    %p31 = scmp.eq.s32.totalorder %s12, 0
    %p32 = por %p30, %p31
    %p33 = scmp.ne.s32.totalorder %s22, %s25
    %p34 = scmp.eq.s32.totalorder %s17, 1
    %p35 = por %p33, %p34
    %p36 = scmp.ne.s32.totalorder %s25, %s26
    %p37 = scmp.eq.s32.totalorder %s17, 0
    %p38 = por %p36, %p37
    %p39 = scmp.ne.s32.totalorder %s25, %s26
    %p40 = scmp.eq.s32.totalorder %s18, 1
    %p41 = por %p39, %p40
    %p43 = scmp.ne.s32.totalorder %s26, %s42
    %p44 = scmp.eq.s32.totalorder %s18, 0
    %p45 = por %p43, %p44
    %s46 = ssub.s32 %s12, %s19
    %p47 = scmp.eq.s32.totalorder %s46, 0
    %s49 = sadd.s32 %s48, 1
    %s50 = scalar_select %p47, %s48, %s49
    %p53 = pneg %p47
    %p54 = scmp.eq.s32.totalorder %s12, 1
    %p55 = por %p53, %p54
    %p56 = scmp.ne.s32.totalorder %s48, %s51
    %p57 = scmp.eq.s32.totalorder %s12, 0
    %p58 = por %p56, %p57
    %p59 = scmp.ne.s32.totalorder %s48, %s51
    %p60 = scmp.eq.s32.totalorder %s17, 1
    %p61 = por %p59, %p60
    %p62 = scmp.ne.s32.totalorder %s51, %s52
    %p63 = scmp.eq.s32.totalorder %s17, 0
    %p64 = por %p62, %p63
    %p65 = scmp.ne.s32.totalorder %s51, %s52
    %p66 = scmp.eq.s32.totalorder %s18, 1
    %p67 = por %p65, %p66
    %p69 = scmp.ne.s32.totalorder %s52, %s68
    %p70 = scmp.eq.s32.totalorder %s18, 0
    %p71 = por %p69, %p70
    %s73 = sadd.s32 %s72, 1
    %p76 = scmp.eq.s32.totalorder %s12, 1
    %p77 = scmp.ne.s32.totalorder %s72, %s74
    %p78 = scmp.eq.s32.totalorder %s12, 0
    %p79 = por %p77, %p78
    %p80 = scmp.ne.s32.totalorder %s72, %s74
    %p81 = scmp.eq.s32.totalorder %s17, 1
    %p82 = por %p80, %p81
    %p83 = scmp.ne.s32.totalorder %s74, %s75
    %p84 = scmp.eq.s32.totalorder %s17, 0
    %p85 = por %p83, %p84
    %p86 = scmp.ne.s32.totalorder %s74, %s75
    %p87 = scmp.eq.s32.totalorder %s18, 1
    %p88 = por %p86, %p87
    %p90 = scmp.ne.s32.totalorder %s75, %s89
    %p91 = scmp.eq.s32.totalorder %s18, 0
    %p92 = por %p90, %p91
    %s94 = sadd.s32 %s93, 1
    %p97 = scmp.eq.s32.totalorder %s12, 1
    %p98 = scmp.ne.s32.totalorder %s93, %s95
    %p99 = scmp.eq.s32.totalorder %s12, 0
    %p100 = por %p98, %p99
    %p101 = scmp.ne.s32.totalorder %s93, %s95
    %p102 = scmp.eq.s32.totalorder %s17, 1
    %p103 = por %p101, %p102
    %p104 = scmp.ne.s32.totalorder %s95, %s96
    %p105 = scmp.eq.s32.totalorder %s17, 0
    %p106 = por %p104, %p105
    %p107 = scmp.ne.s32.totalorder %s95, %s96
    %p108 = scmp.eq.s32.totalorder %s18, 1
    %p109 = por %p107, %p108
    %p111 = scmp.ne.s32.totalorder %s96, %s110
    %p112 = scmp.eq.s32.totalorder %s18, 0
    %p113 = por %p111, %p112
    %s115 = sadd.s32 %s114, 1
    %p118 = scmp.eq.s32.totalorder %s12, 1
    %p119 = scmp.ne.s32.totalorder %s114, %s116
    %p120 = scmp.eq.s32.totalorder %s12, 0
    %p121 = por %p119, %p120
    %p122 = scmp.ne.s32.totalorder %s114, %s116
    %p123 = scmp.eq.s32.totalorder %s17, 1
    %p124 = por %p122, %p123
    %p125 = scmp.ne.s32.totalorder %s116, %s117
    %p126 = scmp.eq.s32.totalorder %s17, 0
    %p127 = por %p125, %p126
    %p128 = scmp.ne.s32.totalorder %s116, %s117
    %p129 = scmp.eq.s32.totalorder %s18, 1
    %p130 = por %p128, %p129
    %p132 = scmp.ne.s32.totalorder %s117, %s131
    %p133 = scmp.eq.s32.totalorder %s18, 0
    %p134 = por %p132, %p133
    %s136 = sadd.s32 %s135, 1
    %p139 = scmp.eq.s32.totalorder %s12, 1
    %p140 = scmp.ne.s32.totalorder %s135, %s137
    %p141 = scmp.eq.s32.totalorder %s12, 0
    %p142 = por %p140, %p141
    %p143 = scmp.ne.s32.totalorder %s135, %s137
    %p144 = scmp.eq.s32.totalorder %s17, 1
    %p145 = por %p143, %p144
    %p146 = scmp.ne.s32.totalorder %s137, %s138
    %p147 = scmp.eq.s32.totalorder %s17, 0
    %p148 = por %p146, %p147
    %p149 = scmp.ne.s32.totalorder %s137, %s138
    %p150 = scmp.eq.s32.totalorder %s18, 1
    %p151 = por %p149, %p150
    %p153 = scmp.ne.s32.totalorder %s138, %s152
    %p154 = scmp.eq.s32.totalorder %s18, 0
    %p155 = por %p153, %p154
    %s156 = ssub.s32 %s12, %s19
    %p157 = scmp.eq.s32.totalorder %s156, 0
    %s159 = sadd.s32 %s158, 1
    %s160 = scalar_select %p157, %s158, %s159
    %p163 = pneg %p157
    %p164 = scmp.eq.s32.totalorder %s12, 1
    %p165 = por %p163, %p164
    %p166 = scmp.ne.s32.totalorder %s158, %s161
    %p167 = scmp.eq.s32.totalorder %s12, 0
    %p168 = por %p166, %p167
    %p169 = scmp.ne.s32.totalorder %s158, %s161
    %p170 = scmp.eq.s32.totalorder %s17, 1
    %p171 = por %p169, %p170
    %p172 = scmp.ne.s32.totalorder %s161, %s162
    %p173 = scmp.eq.s32.totalorder %s17, 0
    %p174 = por %p172, %p173
    %p175 = scmp.ne.s32.totalorder %s161, %s162
    %p176 = scmp.eq.s32.totalorder %s18, 1
    %p177 = por %p175, %p176
    %p179 = scmp.ne.s32.totalorder %s162, %s178
    %p180 = scmp.eq.s32.totalorder %s18, 0
    %p181 = por %p179, %p180
    %p182 = scmp.le.s32.totalorder 1, %s12
    %p183 = scmp.lt.s32.totalorder %s12, 3
    %p184 = pnand %p182, %p183
    %p185 = pneg %p184
    // Predicated region
    $region9: #{tpu_custom_call.1} parent=5 // pred_check
      _
    $region10: #{tpu_custom_call.1} parent=5 // pred_check_branch
      %187 = sbr.rel (%p184) target = $region12
    $region11: #{tpu_custom_call.1} parent=5 // pred_region
      %s188 = ssub.s32 %s12, 1
      // Predicated region
      $region13: #{tpu_custom_call.1} parent=11 // pred_check
        %p189 = pneg %p85
      $region14: #{tpu_custom_call.1} parent=11 // pred_check_branch
        %191 = sbr.rel (%p189) target = $region16
      $region15: #{tpu_custom_call.1} parent=11 // pred_region
        _
      $region16: #{tpu_custom_call.1} parent=11 // pred_fallthru
        _
      // Predicated region
      $region17: #{tpu_custom_call.1} parent=11 // pred_check
        %p192 = pneg %p106
      $region18: #{tpu_custom_call.1} parent=11 // pred_check_branch
        %194 = sbr.rel (%p192) target = $region20
      $region19: #{tpu_custom_call.1} parent=11 // pred_region
        _
      $region20: #{tpu_custom_call.1} parent=11 // pred_fallthru
        _
      // Predicated region
      $region21: #{tpu_custom_call.1} parent=11 // pred_check
        %p195 = pneg %p127
      $region22: #{tpu_custom_call.1} parent=11 // pred_check_branch
        %197 = sbr.rel (%p195) target = $region24
      $region23: #{tpu_custom_call.1} parent=11 // pred_region
        _
      $region24: #{tpu_custom_call.1} parent=11 // pred_fallthru
        _
      // Predicated region
      $region25: #{tpu_custom_call.1} parent=11 // pred_check
        %p198 = pneg %p148
      $region26: #{tpu_custom_call.1} parent=11 // pred_check_branch
        %200 = sbr.rel (%p198) target = $region28
      $region27: #{tpu_custom_call.1} parent=11 // pred_region
        _
      $region28: #{tpu_custom_call.1} parent=11 // pred_fallthru
        _
    $region12: #{tpu_custom_call.1} parent=5 // pred_fallthru
      _
    %p201 = scmp.lt.s32.totalorder %s12, 2
    // Predicated region
    $region29: #{tpu_custom_call.1} parent=5 // pred_check
      %p202 = pneg %p201
    $region30: #{tpu_custom_call.1} parent=5 // pred_check_branch
      %204 = sbr.rel (%p202) target = $region32
    $region31: #{tpu_custom_call.1} parent=5 // pred_region
      // Predicated region
      $region33: #{tpu_custom_call.1} parent=31 // pred_check
        %p205 = pneg %p32
      $region34: #{tpu_custom_call.1} parent=31 // pred_check_branch
        %207 = sbr.rel (%p205) target = $region36
      $region35: #{tpu_custom_call.1} parent=31 // pred_region
        %p208 = scmp.lt.s32.totalorder %s12, 1
        %s209 = scalar_select %p208, %s12, 1
        %s210 = smul.addr %s209, 2
        %s211 = smul.addr %s210, 8
        %s212 = scalar_lea.vmem %s0, %s211
      $region36: #{tpu_custom_call.1} parent=31 // pred_fallthru
        _
      // Predicated region
      $region37: #{tpu_custom_call.1} parent=31 // pred_check
        %p213 = pneg %p58
      $region38: #{tpu_custom_call.1} parent=31 // pred_check_branch
        %215 = sbr.rel (%p213) target = $region40
      $region39: #{tpu_custom_call.1} parent=31 // pred_region
        %p216 = scmp.lt.s32.totalorder %s12, 1
        %s217 = scalar_select %p216, %s12, 1
        %s218 = smul.addr %s217, 2
        %s219 = smul.addr %s218, 8
        %s220 = scalar_lea.vmem %s1, %s219
      $region40: #{tpu_custom_call.1} parent=31 // pred_fallthru
        _
    $region32: #{tpu_custom_call.1} parent=5 // pred_fallthru
      _
    %p221 = scmp.le.s32.totalorder 1, %s12
    %p222 = scmp.lt.s32.totalorder %s12, 3
    %p223 = pnand %p221, %p222
    %p224 = pneg %p223
    // Predicated region
    $region41: #{tpu_custom_call.1} parent=5 // pred_check
      _
    $region42: #{tpu_custom_call.1} parent=5 // pred_check_branch
      %226 = sbr.rel (%p223) target = $region44
    $region43: #{tpu_custom_call.1} parent=5 // pred_region
      %s227 = ssub.s32 %s12, 1
      %p228 = scmp.lt.s32.totalorder %s17, 1
      %s229 = scalar_select %p228, %s17, 1
      %s230 = smul.addr %s229, 2
      %s231 = smul.addr %s230, 8
      %s232 = scalar_lea.vmem %s0, %s231
      %p233 = pneg %p38
      %p234 = pneg %p35
      %p235 = scmp.lt.s32.totalorder %s17, 1
      %s236 = scalar_select %p235, %s17, 1
      %s237 = smul.addr %s236, 2
      %s238 = smul.addr %s237, 8
      %s239 = scalar_lea.vmem %s1, %s238
      %p240 = pneg %p64
      %p241 = pneg %p61
      %p242 = pneg %p85
      %p243 = pneg %p82
      %p244 = pneg %p106
      %p245 = pneg %p103
      %p246 = pneg %p127
      %p247 = pneg %p124
      %p248 = pneg %p148
      %p249 = pneg %p145
      %p250 = pneg %p174
      %p251 = pneg %p171
      %p252 = scmp.lt.s32.totalorder %s17, 1
      %s253 = scalar_select %p252, %s17, 1
      %s254 = smul.addr %s253, 2
      %s255 = smul.addr %s254, 8
      %s256 = scalar_lea.vmem %s6, %s255
      %p257 = scmp.lt.s32.totalorder %s17, 1
      %s258 = scalar_select %p257, %s17, 1
      %s259 = smul.addr %s258, 2
      %s260 = smul.addr %s259, 8
      %s261 = scalar_lea.vmem %s0, %s260
      %p262 = scmp.lt.s32.totalorder %s17, 1
      %s263 = scalar_select %p262, %s17, 1
      %s264 = smul.addr %s263, 2
      %s265 = smul.addr %s264, 8
      %s266 = scalar_lea.vmem %s1, %s265
      %p267 = scmp.lt.s32.totalorder %s17, 1
      %s268 = scalar_select %p267, %s17, 1
      %s269 = smul.addr %s268, 2
      %s270 = smul.addr %s269, 8
      %s271 = scalar_lea.vmem %s6, %s270
      %v272 = vld [vmem:[%s266] sm:$0xff]
      %v273 = vld [vmem:[%s266 + $0x8] sm:$0xff]
      %v274 = vld [vmem:[%s261] sm:$0xff]
      %v275 = vld [vmem:[%s261 + $0x8] sm:$0xff]
      %vm276 = vcmask 130048
      %v278 = vsel %vm276, %v272, 0
      %v281 = vsel %vm276, %v273, 0
      %283 = vmatpush.msra.mxu0 0.0
      %284 = vmatpush.msra.mxu0 0.0
      %285 = vmatpush.msra.mxu0 0.0
      %286 = vmatpush.msra.mxu0 0.0
      %287 = vmatpush.msra.mxu0 0.0
      %288 = vmatpush.msra.mxu0 0.0
      %289 = vmatpush.msra.mxu0 0.0
      %290 = vmatpush.msra.mxu0 0.0
      %291 = vmatpush.msra.mxu0 0.0
      %292 = vmatpush.msra.mxu0 0.0
      %293 = vmatpush.msra.mxu0 0.0
      %294 = vmatpush.msra.mxu0 0.0
      %295 = vmatpush.msra.mxu0 0.0
      %296 = vmatpush.msra.mxu0 0.0
      %297 = vmatpush.msra.mxu0 %v275
      %298 = vmatpush.msra.mxu0 %v274
      %299 = vmatmul.f32.gmra.mxu0 %v278
      %v300 = vpop.f32.mrf.mxu0
      %v301 = vadd.f32 0.0, %v300
      %302 = vmatmul.f32.gmra.mxu0 %v281
      %v303 = vpop.f32.mrf.mxu0
      %v304 = vadd.f32 0.0, %v303
      %305 = vdwg.mxu0
      %v306 = vld [vmem:[%s2] sm:$0xff]
      %v307 = vld [vmem:[%s3] sm:$0x1]
      %v309 = vperm.slane %v307, 0
      %vm311 = vcmask 64512
      %v313 = vsel %vm311, %v301, 0
      %v316 = vsel %vm311, %v304, 0
      %318 = vmatpush.msra.mxu0 0.0
      %319 = vmatpush.msra.mxu0 0.0
      %320 = vmatpush.msra.mxu0 0.0
      %321 = vmatpush.msra.mxu0 0.0
      %322 = vmatpush.msra.mxu0 0.0
      %323 = vmatpush.msra.mxu0 0.0
      %324 = vmatpush.msra.mxu0 0.0
      %325 = vmatpush.msra.mxu0 0.0
      %326 = vmatpush.msra.mxu0 0.0
      %327 = vmatpush.msra.mxu0 0.0
      %328 = vmatpush.msra.mxu0 0.0
      %329 = vmatpush.msra.mxu0 0.0
      %330 = vmatpush.msra.mxu0 0.0
      %331 = vmatpush.msra.mxu0 0.0
      %332 = vmatpush.msra.mxu0 0.0
      %333 = vmatpush.msra.mxu0 %v306
      %334 = vmatmul.f32.gmra.mxu0 %v313
      %v335 = vpop.f32.mrf.mxu0
      %v336 = vadd.f32 %v309, %v335
      %337 = vmatmul.f32.gmra.mxu0 %v316
      %v338 = vpop.f32.mrf.mxu0
      %v339 = vadd.f32 %v309, %v338
      %340 = vdwg.mxu0
      %v341 = vmax.f32 %v336, 0.0
      %v342 = vmax.f32 %v339, 0.0
      %v343 = vld [vmem:[%s4] sm:$0xff]
      %v344 = vld [vmem:[%s4 + $0x8] sm:$0xff]
      %v345 = vld [vmem:[%s4 + $0x10] sm:$0xff]
      %v346 = vld [vmem:[%s4 + $0x18] sm:$0xff]
      %vm347 = vcmask 261120
      %v349 = vsel %vm347, %v341, 0
      %v352 = vsel %vm347, %v342, 0
      %354 = vmatpush.msra.mxu0 0.0
      %355 = vmatpush.msra.mxu0 0.0
      %356 = vmatpush.msra.mxu0 0.0
      %357 = vmatpush.msra.mxu0 0.0
      %358 = vmatpush.msra.mxu0 0.0
      %359 = vmatpush.msra.mxu0 0.0
      %360 = vmatpush.msra.mxu0 0.0
      %361 = vmatpush.msra.mxu0 0.0
      %362 = vmatpush.msra.mxu0 0.0
      %363 = vmatpush.msra.mxu0 0.0
      %364 = vmatpush.msra.mxu0 0.0
      %365 = vmatpush.msra.mxu0 0.0
      %366 = vmatpush.msra.mxu0 %v346
      %367 = vmatpush.msra.mxu0 %v345
      %368 = vmatpush.msra.mxu0 %v344
      %369 = vmatpush.msra.mxu0 %v343
      %370 = vmatmul.f32.gmra.mxu0 %v349
      %v371 = vpop.f32.mrf.mxu0
      %v372 = vadd.f32 0.0, %v371
      %373 = vmatmul.f32.gmra.mxu0 %v352
      %v374 = vpop.f32.mrf.mxu0
      %v375 = vadd.f32 0.0, %v374
      %376 = vdwg.mxu0
      %v377 = vld [vmem:[%s5] sm:$0x1]
      %v379 = vperm.slane %v377, 0
      %381 = vmatpush.msra.mxu0 0.0
      %382 = vmatpush.msra.mxu0 0.0
      %383 = vmatpush.msra.mxu0 0.0
      %384 = vmatpush.msra.mxu0 0.0
      %385 = vmatpush.msra.mxu0 0.0
      %386 = vmatpush.msra.mxu0 0.0
      %387 = vmatpush.msra.mxu0 0.0
      %388 = vmatpush.msra.mxu0 0.0
      %389 = vmatpush.msra.mxu0 0.0
      %390 = vmatpush.msra.mxu0 0.0
      %391 = vmatpush.msra.mxu0 0.0
      %392 = vmatpush.msra.mxu0 0.0
      %393 = vmatpush.msra.mxu0 0.0
      %394 = vmatpush.msra.mxu0 0.0
      %395 = vmatpush.msra.mxu0 %v375
      %396 = vmatpush.msra.mxu0 %v372
      %397 = vmatmul.f32.gmra.mxu0 %v278
      %v398 = vpop.f32.mrf.mxu0
      %v399 = vadd.f32 %v379, %v398
      %400 = vmatmul.f32.gmra.mxu0 %v281
      %v401 = vpop.f32.mrf.mxu0
      %v402 = vadd.f32 %v379, %v401
      %403 = vdwg.mxu0
      %v404 = vtanh.pop %v399
      %v405 = vtanh.pop %v402
      %406 = vst.msk [vmem:[%s271] sm:$0xff] %vm311, %v404
      %407 = vst.msk [vmem:[%s271 + $0x8] sm:$0xff] %vm311, %v405
      %p408 = scmp.lt.s32.totalorder %s17, 1
      %s409 = scalar_select %p408, %s17, 1
      %s410 = smul.addr %s409, 2
      %s411 = smul.addr %s410, 8
      %s412 = scalar_lea.vmem %s6, %s411
      // Predicated region
      $region45: #{tpu_custom_call.1} parent=43 // pred_check
        %p413 = pneg %p171
      $region46: #{tpu_custom_call.1} parent=43 // pred_check_branch
        %415 = sbr.rel (%p413) target = $region48
      $region47: #{tpu_custom_call.1} parent=43 // pred_region
        _
      $region48: #{tpu_custom_call.1} parent=43 // pred_fallthru
        _
    $region44: #{tpu_custom_call.1} parent=5 // pred_fallthru
      _
    %p416 = scmp.le.s32.totalorder 2, %s12
    // Predicated region
    $region49: #{tpu_custom_call.1} parent=5 // pred_check
      %p417 = pneg %p416
    $region50: #{tpu_custom_call.1} parent=5 // pred_check_branch
      %419 = sbr.rel (%p417) target = $region52
    $region51: #{tpu_custom_call.1} parent=5 // pred_region
      %s420 = ssub.s32 %s12, 2
      // Predicated region
      $region53: #{tpu_custom_call.1} parent=51 // pred_check
        %p421 = pneg %p177
      $region54: #{tpu_custom_call.1} parent=51 // pred_check_branch
        %423 = sbr.rel (%p421) target = $region56
      $region55: #{tpu_custom_call.1} parent=51 // pred_region
        %p424 = scmp.lt.s32.totalorder %s18, 1
        %s425 = scalar_select %p424, %s18, 1
        %s426 = smul.addr %s425, 2
        %s427 = smul.addr %s426, 8
        %s428 = scalar_lea.vmem %s6, %s427
      $region56: #{tpu_custom_call.1} parent=51 // pred_fallthru
        _
    $region52: #{tpu_custom_call.1} parent=5 // pred_fallthru
      _
  $region6: #{tpu_custom_call.1} parent=0 // loop_footer
    %s16 = sadd.s32 1, %s12
  $region7: #{tpu_custom_call.1} parent=0 // loop_footer_branch
    %11 = sbr.rel target = $region3
  $region8: #{tpu_custom_call.1} parent=0 // loop_exit
    _

// kernel: tpu_custom_call.1
$region0: #{tpu_custom_call.1}
  #allocation0 [shape = 'u32[]', space=smem, size = 0x4, offset = 0x4, fixed_abs, tag = 'smem constant byte address 0x4 - core index']
  #allocation1 [shape = 'u32[72,128]{1,0:T(1,128)}', space=vmem, size = 0x9000, scoped, tag = 'internal scratch']
  %s0 = inlined_call_operand.vmem [shape: f32[2,16,8], index: 0, kind: input, shape index: {}]
  %s1 = inlined_call_operand.vmem [shape: f32[2,16,16], index: 1, kind: input, shape index: {}]
  %s2 = inlined_call_operand.vmem [shape: f32[8,32], index: 2, kind: input, shape index: {}]
  %s3 = inlined_call_operand.vmem [shape: f32[1,32], index: 3, kind: input, shape index: {}]
  %s4 = inlined_call_operand.vmem [shape: f32[32,8], index: 4, kind: input, shape index: {}]
  %s5 = inlined_call_operand.vmem [shape: f32[1,8], index: 5, kind: input, shape index: {}]
  %s6 = inlined_call_operand.vmem [shape: f32[2,16,8], index: 6, kind: output, shape index: {}]
  %s7 = sld [smem:[#allocation0]]
  $region57: #{tpu_custom_call.1} parent=0
    _
  %s9 = ssub.s32 1, %s7
  %s10 = scalar_select 0, %s9, %s7
  loop: start=0, step=1, limit=4
  $region2: #{tpu_custom_call.1} parent=0 // loop_pre_header
    _
  $region3: #{tpu_custom_call.1} parent=0 // loop_header
    %s12 = sphi 0, %s16
    %p13 = scmp.ge.s32.totalorder %s12, 4
    %s22 = sphi 0, %s24
    %s25 = sphi 0, %s22
    %s26 = sphi 0, %s25
    %s42 = sphi 0, %s26
    %s48 = sphi 0, %s50
    %s51 = sphi 0, %s48
    %s52 = sphi 0, %s51
    %s68 = sphi 0, %s52
    %s72 = sphi 0, %s72
    %s74 = sphi 0, %s72
    %s75 = sphi 0, %s74
    %s89 = sphi 0, %s75
    %s93 = sphi 0, %s93
    %s95 = sphi 0, %s93
    %s96 = sphi 0, %s95
    %s110 = sphi 0, %s96
    %s114 = sphi 0, %s114
    %s116 = sphi 0, %s114
    %s117 = sphi 0, %s116
    %s131 = sphi 0, %s117
    %s135 = sphi 0, %s135
    %s137 = sphi 0, %s135
    %s138 = sphi 0, %s137
    %s152 = sphi 0, %s138
    %s158 = sphi 0, %s160
    %s161 = sphi 0, %s158
    %s162 = sphi 0, %s161
    %s178 = sphi 0, %s162
  $region4: #{tpu_custom_call.1} parent=0 // loop_header_branch
    %15 = sbr.rel (%p13) target = $region8
  $region5: #{tpu_custom_call.1} parent=0 // loop_body
    %s17 = ssub.s32 %s12, 1
    %s18 = ssub.s32 %s12, 2
    %s19 = sadd.s32 %s12, 1
    %s20 = ssub.s32 %s12, %s19
    %p21 = scmp.eq.s32.totalorder %s20, 0
    %s23 = sadd.s32 %s22, 1
    %s24 = scalar_select %p21, %s22, %s23
    %p27 = pneg %p21
    %p28 = scmp.eq.s32.totalorder %s12, 1
    %p29 = por %p27, %p28
    %p30 = scmp.ne.s32.totalorder %s22, %s25
    %p31 = scmp.eq.s32.totalorder %s12, 0
    %p32 = por %p30, %p31
    %p33 = scmp.ne.s32.totalorder %s22, %s25
    %p34 = scmp.eq.s32.totalorder %s17, 1
    %p35 = por %p33, %p34
    %p36 = scmp.ne.s32.totalorder %s25, %s26
    %p37 = scmp.eq.s32.totalorder %s17, 0
    %p38 = por %p36, %p37
    %p39 = scmp.ne.s32.totalorder %s25, %s26
    %p40 = scmp.eq.s32.totalorder %s18, 1
    %p41 = por %p39, %p40
    %p43 = scmp.ne.s32.totalorder %s26, %s42
    %p44 = scmp.eq.s32.totalorder %s18, 0
    %p45 = por %p43, %p44
    %s46 = ssub.s32 %s12, %s19
    %p47 = scmp.eq.s32.totalorder %s46, 0
    %s49 = sadd.s32 %s48, 1
    %s50 = scalar_select %p47, %s48, %s49
    %p53 = pneg %p47
    %p54 = scmp.eq.s32.totalorder %s12, 1
    %p55 = por %p53, %p54
    %p56 = scmp.ne.s32.totalorder %s48, %s51
    %p57 = scmp.eq.s32.totalorder %s12, 0
    %p58 = por %p56, %p57
    %p59 = scmp.ne.s32.totalorder %s48, %s51
    %p60 = scmp.eq.s32.totalorder %s17, 1
    %p61 = por %p59, %p60
    %p62 = scmp.ne.s32.totalorder %s51, %s52
    %p63 = scmp.eq.s32.totalorder %s17, 0
    %p64 = por %p62, %p63
    %p65 = scmp.ne.s32.totalorder %s51, %s52
    %p66 = scmp.eq.s32.totalorder %s18, 1
    %p67 = por %p65, %p66
    %p69 = scmp.ne.s32.totalorder %s52, %s68
    %p70 = scmp.eq.s32.totalorder %s18, 0
    %p71 = por %p69, %p70
    %s73 = sadd.s32 %s72, 1
    %p76 = scmp.eq.s32.totalorder %s12, 1
    %p77 = scmp.ne.s32.totalorder %s72, %s74
    %p78 = scmp.eq.s32.totalorder %s12, 0
    %p79 = por %p77, %p78
    %p80 = scmp.ne.s32.totalorder %s72, %s74
    %p81 = scmp.eq.s32.totalorder %s17, 1
    %p82 = por %p80, %p81
    %p83 = scmp.ne.s32.totalorder %s74, %s75
    %p84 = scmp.eq.s32.totalorder %s17, 0
    %p85 = por %p83, %p84
    %p86 = scmp.ne.s32.totalorder %s74, %s75
    %p87 = scmp.eq.s32.totalorder %s18, 1
    %p88 = por %p86, %p87
    %p90 = scmp.ne.s32.totalorder %s75, %s89
    %p91 = scmp.eq.s32.totalorder %s18, 0
    %p92 = por %p90, %p91
    %s94 = sadd.s32 %s93, 1
    %p97 = scmp.eq.s32.totalorder %s12, 1
    %p98 = scmp.ne.s32.totalorder %s93, %s95
    %p99 = scmp.eq.s32.totalorder %s12, 0
    %p100 = por %p98, %p99
    %p101 = scmp.ne.s32.totalorder %s93, %s95
    %p102 = scmp.eq.s32.totalorder %s17, 1
    %p103 = por %p101, %p102
    %p104 = scmp.ne.s32.totalorder %s95, %s96
    %p105 = scmp.eq.s32.totalorder %s17, 0
    %p106 = por %p104, %p105
    %p107 = scmp.ne.s32.totalorder %s95, %s96
    %p108 = scmp.eq.s32.totalorder %s18, 1
    %p109 = por %p107, %p108
    %p111 = scmp.ne.s32.totalorder %s96, %s110
    %p112 = scmp.eq.s32.totalorder %s18, 0
    %p113 = por %p111, %p112
    %s115 = sadd.s32 %s114, 1
    %p118 = scmp.eq.s32.totalorder %s12, 1
    %p119 = scmp.ne.s32.totalorder %s114, %s116
    %p120 = scmp.eq.s32.totalorder %s12, 0
    %p121 = por %p119, %p120
    %p122 = scmp.ne.s32.totalorder %s114, %s116
    %p123 = scmp.eq.s32.totalorder %s17, 1
    %p124 = por %p122, %p123
    %p125 = scmp.ne.s32.totalorder %s116, %s117
    %p126 = scmp.eq.s32.totalorder %s17, 0
    %p127 = por %p125, %p126
    %p128 = scmp.ne.s32.totalorder %s116, %s117
    %p129 = scmp.eq.s32.totalorder %s18, 1
    %p130 = por %p128, %p129
    %p132 = scmp.ne.s32.totalorder %s117, %s131
    %p133 = scmp.eq.s32.totalorder %s18, 0
    %p134 = por %p132, %p133
    %s136 = sadd.s32 %s135, 1
    %p139 = scmp.eq.s32.totalorder %s12, 1
    %p140 = scmp.ne.s32.totalorder %s135, %s137
    %p141 = scmp.eq.s32.totalorder %s12, 0
    %p142 = por %p140, %p141
    %p143 = scmp.ne.s32.totalorder %s135, %s137
    %p144 = scmp.eq.s32.totalorder %s17, 1
    %p145 = por %p143, %p144
    %p146 = scmp.ne.s32.totalorder %s137, %s138
    %p147 = scmp.eq.s32.totalorder %s17, 0
    %p148 = por %p146, %p147
    %p149 = scmp.ne.s32.totalorder %s137, %s138
    %p150 = scmp.eq.s32.totalorder %s18, 1
    %p151 = por %p149, %p150
    %p153 = scmp.ne.s32.totalorder %s138, %s152
    %p154 = scmp.eq.s32.totalorder %s18, 0
    %p155 = por %p153, %p154
    %s156 = ssub.s32 %s12, %s19
    %p157 = scmp.eq.s32.totalorder %s156, 0
    %s159 = sadd.s32 %s158, 1
    %s160 = scalar_select %p157, %s158, %s159
    %p163 = pneg %p157
    %p164 = scmp.eq.s32.totalorder %s12, 1
    %p165 = por %p163, %p164
    %p166 = scmp.ne.s32.totalorder %s158, %s161
    %p167 = scmp.eq.s32.totalorder %s12, 0
    %p168 = por %p166, %p167
    %p169 = scmp.ne.s32.totalorder %s158, %s161
    %p170 = scmp.eq.s32.totalorder %s17, 1
    %p171 = por %p169, %p170
    %p172 = scmp.ne.s32.totalorder %s161, %s162
    %p173 = scmp.eq.s32.totalorder %s17, 0
    %p174 = por %p172, %p173
    %p175 = scmp.ne.s32.totalorder %s161, %s162
    %p176 = scmp.eq.s32.totalorder %s18, 1
    %p177 = por %p175, %p176
    %p179 = scmp.ne.s32.totalorder %s162, %s178
    %p180 = scmp.eq.s32.totalorder %s18, 0
    %p181 = por %p179, %p180
    %p182 = scmp.le.s32.totalorder 1, %s12
    %p183 = scmp.lt.s32.totalorder %s12, 3
    %p184 = pnand %p182, %p183
    %p185 = pneg %p184
    // Predicated region
    $region9: #{tpu_custom_call.1} parent=5 // pred_check
      _
    $region10: #{tpu_custom_call.1} parent=5 // pred_check_branch
      %187 = sbr.rel (%p184) target = $region12
    $region11: #{tpu_custom_call.1} parent=5 // pred_region
      %s188 = ssub.s32 %s12, 1
      // Predicated region
      $region13: #{tpu_custom_call.1} parent=11 // pred_check
        %p189 = pneg %p85
      $region14: #{tpu_custom_call.1} parent=11 // pred_check_branch
        %191 = sbr.rel (%p189) target = $region16
      $region15: #{tpu_custom_call.1} parent=11 // pred_region
        _
      $region16: #{tpu_custom_call.1} parent=11 // pred_fallthru
        _
      // Predicated region
      $region17: #{tpu_custom_call.1} parent=11 // pred_check
        %p192 = pneg %p106
      $region18: #{tpu_custom_call.1} parent=11 // pred_check_branch
        %194 = sbr.rel (%p192) target = $region20
      $region19: #{tpu_custom_call.1} parent=11 // pred_region
        _
      $region20: #{tpu_custom_call.1} parent=11 // pred_fallthru
        _
      // Predicated region
      $region21: #{tpu_custom_call.1} parent=11 // pred_check
        %p195 = pneg %p127
      $region22: #{tpu_custom_call.1} parent=11 // pred_check_branch
        %197 = sbr.rel (%p195) target = $region24
      $region23: #{tpu_custom_call.1} parent=11 // pred_region
        _
      $region24: #{tpu_custom_call.1} parent=11 // pred_fallthru
        _
      // Predicated region
      $region25: #{tpu_custom_call.1} parent=11 // pred_check
        %p198 = pneg %p148
      $region26: #{tpu_custom_call.1} parent=11 // pred_check_branch
        %200 = sbr.rel (%p198) target = $region28
      $region27: #{tpu_custom_call.1} parent=11 // pred_region
        _
      $region28: #{tpu_custom_call.1} parent=11 // pred_fallthru
        _
    $region12: #{tpu_custom_call.1} parent=5 // pred_fallthru
      _
    %p201 = scmp.lt.s32.totalorder %s12, 2
    // Predicated region
    $region29: #{tpu_custom_call.1} parent=5 // pred_check
      %p202 = pneg %p201
    $region30: #{tpu_custom_call.1} parent=5 // pred_check_branch
      %204 = sbr.rel (%p202) target = $region32
    $region31: #{tpu_custom_call.1} parent=5 // pred_region
      // Predicated region
      $region33: #{tpu_custom_call.1} parent=31 // pred_check
        %p205 = pneg %p32
      $region34: #{tpu_custom_call.1} parent=31 // pred_check_branch
        %207 = sbr.rel (%p205) target = $region36
      $region35: #{tpu_custom_call.1} parent=31 // pred_region
        %p208 = scmp.lt.s32.totalorder %s12, 1
        %s209 = scalar_select %p208, %s12, 1
        %s210 = smul.addr %s209, 2
        %s211 = smul.addr %s210, 8
        %s212 = scalar_lea.vmem %s0, %s211
      $region36: #{tpu_custom_call.1} parent=31 // pred_fallthru
        _
      // Predicated region
      $region37: #{tpu_custom_call.1} parent=31 // pred_check
        %p213 = pneg %p58
      $region38: #{tpu_custom_call.1} parent=31 // pred_check_branch
        %215 = sbr.rel (%p213) target = $region40
      $region39: #{tpu_custom_call.1} parent=31 // pred_region
        %p216 = scmp.lt.s32.totalorder %s12, 1
        %s217 = scalar_select %p216, %s12, 1
        %s218 = smul.addr %s217, 2
        %s219 = smul.addr %s218, 8
        %s220 = scalar_lea.vmem %s1, %s219
      $region40: #{tpu_custom_call.1} parent=31 // pred_fallthru
        _
    $region32: #{tpu_custom_call.1} parent=5 // pred_fallthru
      _
    %p221 = scmp.le.s32.totalorder 1, %s12
    %p222 = scmp.lt.s32.totalorder %s12, 3
    %p223 = pnand %p221, %p222
    %p224 = pneg %p223
    // Predicated region
    $region41: #{tpu_custom_call.1} parent=5 // pred_check
      _
    $region42: #{tpu_custom_call.1} parent=5 // pred_check_branch
      %226 = sbr.rel (%p223) target = $region44
    $region43: #{tpu_custom_call.1} parent=5 // pred_region
      %s227 = ssub.s32 %s12, 1
      %p228 = scmp.lt.s32.totalorder %s17, 1
      %s229 = scalar_select %p228, %s17, 1
      %s230 = smul.addr %s229, 2
      %s231 = smul.addr %s230, 8
      %s232 = scalar_lea.vmem %s0, %s231
      %p233 = pneg %p38
      %p234 = pneg %p35
      %p235 = scmp.lt.s32.totalorder %s17, 1
      %s236 = scalar_select %p235, %s17, 1
      %s237 = smul.addr %s236, 2
      %s238 = smul.addr %s237, 8
      %s239 = scalar_lea.vmem %s1, %s238
      %p240 = pneg %p64
      %p241 = pneg %p61
      %p242 = pneg %p85
      %p243 = pneg %p82
      %p244 = pneg %p106
      %p245 = pneg %p103
      %p246 = pneg %p127
      %p247 = pneg %p124
      %p248 = pneg %p148
      %p249 = pneg %p145
      %p250 = pneg %p174
      %p251 = pneg %p171
      %p252 = scmp.lt.s32.totalorder %s17, 1
      %s253 = scalar_select %p252, %s17, 1
      %s254 = smul.addr %s253, 2
      %s255 = smul.addr %s254, 8
      %s256 = scalar_lea.vmem %s6, %s255
      %p257 = scmp.lt.s32.totalorder %s17, 1
      %s258 = scalar_select %p257, %s17, 1
      %s259 = smul.addr %s258, 2
      %s260 = smul.addr %s259, 8
      %s261 = scalar_lea.vmem %s0, %s260
      %p262 = scmp.lt.s32.totalorder %s17, 1
      %s263 = scalar_select %p262, %s17, 1
      %s264 = smul.addr %s263, 2
      %s265 = smul.addr %s264, 8
      %s266 = scalar_lea.vmem %s1, %s265
      %p267 = scmp.lt.s32.totalorder %s17, 1
      %s268 = scalar_select %p267, %s17, 1
      %s269 = smul.addr %s268, 2
      %s270 = smul.addr %s269, 8
      %s271 = scalar_lea.vmem %s6, %s270
      %v272 = vld [vmem:[%s266] sm:$0xff]
      %v273 = vld [vmem:[%s266 + $0x8] sm:$0xff]
      %v274 = vld [vmem:[%s261] sm:$0xff]
      %v275 = vld [vmem:[%s261 + $0x8] sm:$0xff]
      %vm276 = vcmask 130048
      %v278 = vsel %vm276, %v272, 0
      %v281 = vsel %vm276, %v273, 0
      %283 = vmatpush.msra.mxu0 0.0
      %284 = vmatpush.msra.mxu0 0.0
      %285 = vmatpush.msra.mxu0 0.0
      %286 = vmatpush.msra.mxu0 0.0
      %287 = vmatpush.msra.mxu0 0.0
      %288 = vmatpush.msra.mxu0 0.0
      %289 = vmatpush.msra.mxu0 0.0
      %290 = vmatpush.msra.mxu0 0.0
      %291 = vmatpush.msra.mxu0 0.0
      %292 = vmatpush.msra.mxu0 0.0
      %293 = vmatpush.msra.mxu0 0.0
      %294 = vmatpush.msra.mxu0 0.0
      %295 = vmatpush.msra.mxu0 0.0
      %296 = vmatpush.msra.mxu0 0.0
      %297 = vmatpush.msra.mxu0 %v275
      %298 = vmatpush.msra.mxu0 %v274
      %299 = vmatmul.f32.gmra.mxu0 %v278
      %v300 = vpop.f32.mrf.mxu0
      %v301 = vadd.f32 0.0, %v300
      %302 = vmatmul.f32.gmra.mxu0 %v281
      %v303 = vpop.f32.mrf.mxu0
      %v304 = vadd.f32 0.0, %v303
      %305 = vdwg.mxu0
      %v306 = vld [vmem:[%s2] sm:$0xff]
      %v307 = vld [vmem:[%s3] sm:$0x1]
      %v309 = vperm.slane %v307, 0
      %vm311 = vcmask 64512
      %v313 = vsel %vm311, %v301, 0
      %v316 = vsel %vm311, %v304, 0
      %318 = vmatpush.msra.mxu0 0.0
      %319 = vmatpush.msra.mxu0 0.0
      %320 = vmatpush.msra.mxu0 0.0
      %321 = vmatpush.msra.mxu0 0.0
      %322 = vmatpush.msra.mxu0 0.0
      %323 = vmatpush.msra.mxu0 0.0
      %324 = vmatpush.msra.mxu0 0.0
      %325 = vmatpush.msra.mxu0 0.0
      %326 = vmatpush.msra.mxu0 0.0
      %327 = vmatpush.msra.mxu0 0.0
      %328 = vmatpush.msra.mxu0 0.0
      %329 = vmatpush.msra.mxu0 0.0
      %330 = vmatpush.msra.mxu0 0.0
      %331 = vmatpush.msra.mxu0 0.0
      %332 = vmatpush.msra.mxu0 0.0
      %333 = vmatpush.msra.mxu0 %v306
      %334 = vmatmul.f32.gmra.mxu0 %v313
      %v335 = vpop.f32.mrf.mxu0
      %v336 = vadd.f32 %v309, %v335
      %337 = vmatmul.f32.gmra.mxu0 %v316
      %v338 = vpop.f32.mrf.mxu0
      %v339 = vadd.f32 %v309, %v338
      %340 = vdwg.mxu0
      %v341 = vmax.f32 %v336, 0.0
      %v342 = vmax.f32 %v339, 0.0
      %v343 = vld [vmem:[%s4] sm:$0xff]
      %v344 = vld [vmem:[%s4 + $0x8] sm:$0xff]
      %v345 = vld [vmem:[%s4 + $0x10] sm:$0xff]
      %v346 = vld [vmem:[%s4 + $0x18] sm:$0xff]
      %vm347 = vcmask 261120
      %v349 = vsel %vm347, %v341, 0
      %v352 = vsel %vm347, %v342, 0
      %354 = vmatpush.msra.mxu0 0.0
      %355 = vmatpush.msra.mxu0 0.0
      %356 = vmatpush.msra.mxu0 0.0
      %357 = vmatpush.msra.mxu0 0.0
      %358 = vmatpush.msra.mxu0 0.0
      %359 = vmatpush.msra.mxu0 0.0
      %360 = vmatpush.msra.mxu0 0.0
      %361 = vmatpush.msra.mxu0 0.0
      %362 = vmatpush.msra.mxu0 0.0
      %363 = vmatpush.msra.mxu0 0.0
      %364 = vmatpush.msra.mxu0 0.0
      %365 = vmatpush.msra.mxu0 0.0
      %366 = vmatpush.msra.mxu0 %v346
      %367 = vmatpush.msra.mxu0 %v345
      %368 = vmatpush.msra.mxu0 %v344
      %369 = vmatpush.msra.mxu0 %v343
      %370 = vmatmul.f32.gmra.mxu0 %v349
      %v371 = vpop.f32.mrf.mxu0
      %v372 = vadd.f32 0.0, %v371
      %373 = vmatmul.f32.gmra.mxu0 %v352
      %v374 = vpop.f32.mrf.mxu0
      %v375 = vadd.f32 0.0, %v374
      %376 = vdwg.mxu0
      %v377 = vld [vmem:[%s5] sm:$0x1]
      %v379 = vperm.slane %v377, 0
      %381 = vmatpush.msra.mxu0 0.0
      %382 = vmatpush.msra.mxu0 0.0
      %383 = vmatpush.msra.mxu0 0.0
      %384 = vmatpush.msra.mxu0 0.0
      %385 = vmatpush.msra.mxu0 0.0
      %386 = vmatpush.msra.mxu0 0.0
      %387 = vmatpush.msra.mxu0 0.0
      %388 = vmatpush.msra.mxu0 0.0
      %389 = vmatpush.msra.mxu0 0.0
      %390 = vmatpush.msra.mxu0 0.0
      %391 = vmatpush.msra.mxu0 0.0
      %392 = vmatpush.msra.mxu0 0.0
      %393 = vmatpush.msra.mxu0 0.0
      %394 = vmatpush.msra.mxu0 0.0
      %395 = vmatpush.msra.mxu0 %v375
      %396 = vmatpush.msra.mxu0 %v372
      %397 = vmatmul.f32.gmra.mxu0 %v278
      %v398 = vpop.f32.mrf.mxu0
      %v399 = vadd.f32 %v379, %v398
      %400 = vmatmul.f32.gmra.mxu0 %v281
      %v401 = vpop.f32.mrf.mxu0
      %v402 = vadd.f32 %v379, %v401
      %403 = vdwg.mxu0
      %v404 = vtanh.pop %v399
      %v405 = vtanh.pop %v402
      %406 = vst.msk [vmem:[%s271] sm:$0xff] %vm311, %v404
      %407 = vst.msk [vmem:[%s271 + $0x8] sm:$0xff] %vm311, %v405
      %p408 = scmp.lt.s32.totalorder %s17, 1
      %s409 = scalar_select %p408, %s17, 1
      %s410 = smul.addr %s409, 2
      %s411 = smul.addr %s410, 8
      %s412 = scalar_lea.vmem %s6, %s411
      // Predicated region
      $region45: #{tpu_custom_call.1} parent=43 // pred_check
        %p413 = pneg %p171
      $region46: #{tpu_custom_call.1} parent=43 // pred_check_branch
        %415 = sbr.rel (%p413) target = $region48
      $region47: #{tpu_custom_call.1} parent=43 // pred_region
        _
      $region48: #{tpu_custom_call.1} parent=43 // pred_fallthru
        _
    $region44: #{tpu_custom_call.1} parent=5 // pred_fallthru
      _
    %p416 = scmp.le.s32.totalorder 2, %s12
    // Predicated region
    $region49: #{tpu_custom_call.1} parent=5 // pred_check
      %p417 = pneg %p416
    $region50: #{tpu_custom_call.1} parent=5 // pred_check_branch
      %419 = sbr.rel (%p417) target = $region52
    $region51: #{tpu_custom_call.1} parent=5 // pred_region
      %s420 = ssub.s32 %s12, 2
      // Predicated region
      $region53: #{tpu_custom_call.1} parent=51 // pred_check
        %p421 = pneg %p177
      $region54: #{tpu_custom_call.1} parent=51 // pred_check_branch
        %423 = sbr.rel (%p421) target = $region56
      $region55: #{tpu_custom_call.1} parent=51 // pred_region
        %p424 = scmp.lt.s32.totalorder %s18, 1
        %s425 = scalar_select %p424, %s18, 1
        %s426 = smul.addr %s425, 2
        %s427 = smul.addr %s426, 8
        %s428 = scalar_lea.vmem %s6, %s427
      $region56: #{tpu_custom_call.1} parent=51 // pred_fallthru
        _
    $region52: #{tpu_custom_call.1} parent=5 // pred_fallthru
      _
  $region6: #{tpu_custom_call.1} parent=0 // loop_footer
    %s16 = sadd.s32 1, %s12
  $region7: #{tpu_custom_call.1} parent=0 // loop_footer_branch
    %11 = sbr.rel target = $region3
  $region8: #{tpu_custom_call.1} parent=0 // loop_exit
    _

</llo_original>
